<compile_context>
chip_gen: v7x
topology: tpu7x:2x2x1
jax: 0.10.0
libtpu: 0.0.40
codegen_flags: <defaults>
</compile_context>

<pallas_src>
import functools

import jax
import jax.numpy as jnp
import numpy as np
from jax import lax
from jax.experimental import pallas as pl
from jax.experimental.pallas import tpu as pltpu


# ---------------------------------------------------------------------------
# Kernels
# ---------------------------------------------------------------------------

def _layernorm_last_kernel(x_ref, w_ref, b_ref, o_ref, *, eps):
    # x_ref: (TR, C), w_ref/b_ref: (1, C), o_ref: (TR, C). Reduce over lanes.
    x = x_ref[...].astype(jnp.float32)
    mean = jnp.mean(x, axis=-1, keepdims=True)
    ex2 = jnp.mean(x * x, axis=-1, keepdims=True)
    var = jnp.maximum(ex2 - mean * mean, 0.0)          # one-pass, biased
    inv = lax.rsqrt(var + eps)                          # EUP, effectively free
    w = w_ref[...].astype(jnp.float32)
    b = b_ref[...].astype(jnp.float32)
    o_ref[...] = ((x - mean) * inv * w + b).astype(o_ref.dtype)


def _layernorm_last_packed_kernel(x_ref, w_ref, b_ref, o_ref, *, eps, k, c):
    # Lane-packed small-C path: x_ref (TR, k*c) with k*c == 128; k logical
    # rows live side-by-side in the lane dim.  Segmented reduce over each
    # c-wide segment; weight/bias arrive pre-tiled as (1, k*c).
    x = x_ref[...].astype(jnp.float32)                  # (TR, 128) lane-dense
    tr = x.shape[0]
    xs = x.reshape(tr, k, c)
    mean = jnp.mean(xs, axis=-1, keepdims=True)          # (TR, k, 1)
    ex2 = jnp.mean(xs * xs, axis=-1, keepdims=True)
    var = jnp.maximum(ex2 - mean * mean, 0.0)
    inv = lax.rsqrt(var + eps)
    y = ((xs - mean) * inv).reshape(tr, k * c)            # back to lane-dense
    w = w_ref[...].astype(jnp.float32)
    b = b_ref[...].astype(jnp.float32)
    o_ref[...] = (y * w + b).astype(o_ref.dtype)          # full-width vst


def _layernorm_cf_kernel(x_ref, w_ref, b_ref, o_ref, *, eps):
    # channels_first, transpose-free: x_ref (1, C, TS); reduce over the
    # channel (sublane) axis, spatial stays lane-dense.
    x = x_ref[...].astype(jnp.float32)
    mean = jnp.mean(x, axis=1, keepdims=True)
    ex2 = jnp.mean(x * x, axis=1, keepdims=True)
    var = jnp.maximum(ex2 - mean * mean, 0.0)
    inv = lax.rsqrt(var + eps)
    w = w_ref[...].astype(jnp.float32)                   # (1, C, 1)
    b = b_ref[...].astype(jnp.float32)
    o_ref[...] = ((x - mean) * inv * w + b).astype(o_ref.dtype)


# ---------------------------------------------------------------------------
# Device / tile-size / VMEM-budget helpers
# ---------------------------------------------------------------------------

@functools.lru_cache(maxsize=1)
def _tpu_caps():
    """(target_block_bytes, vmem_limit_cap, multi_tc_heuristic).

    128 MiB-VMEM parts (v5e/v6e, 1 TC): bigger blocks, higher scoped limit.
    64 MiB-per-TC parts (v7x, 2 TC): 4 MiB blocks, 48 MiB cap, prefer even
    grid-step counts so both TensorCores get balanced work.
    """
    vmem = 64 << 20   # conservative default (v7x per-TC)
    try:
        info = pltpu.get_tpu_info()
        vmem = int(getattr(info, "vmem_capacity_bytes", vmem))
    except Exception:
        pass
    big_vmem = vmem >= (100 << 20)
    multi_tc = not big_vmem
    target_bytes = (8 << 20) if big_vmem else (4 << 20)
    vmem_cap = (96 << 20) if big_vmem else (48 << 20)
    return target_bytes, vmem_cap, multi_tc


def _sublane_pack(itemsize):
    # Native sublane packing: f32 -> 8, bf16/f16 -> 16, int8/fp8 -> 32.
    return max(8, 32 // max(1, itemsize))


def _vmem_limit_bytes(block_bytes, cap):
    # double-buffered (in + out) blocks + slack, bounded by the per-gen cap.
    need = 4 * block_bytes + (4 << 20)
    return int(min(cap, max(need, 24 << 20)))


def _pick_row_tile(rows, C, itemsize, target_bytes, multi_tc):
    """VMEM-budget-aware row tile for a (rows, C) last-dim-normalized view."""
    pack = _sublane_pack(itemsize)
    budget = (target_bytes // max(1, C * itemsize)) // pack * pack
    budget = int(max(pack, min(budget, 8192)))

    if rows <= budget:
        if multi_tc and rows >= 2 * pack:
            # Split into (about) two blocks so both TensorCores get work.
            half = ((rows + 1) // 2 + pack - 1) // pack * pack
            return min(half, rows)
        return rows                      # full-dim block: largest, no masking

    tr = budget
    floor = max(pack, tr // 2)           # never collapse below half the budget
    t = tr
    while t >= floor:
        if rows % t == 0:                # divisor -> no masked edge block
            tr = t
            break
        t -= pack
    if multi_tc:
        steps = -(-rows // tr)
        if steps % 2:                    # prefer an even step count on 2-TC parts
            t = tr
            while t >= floor:
                if (-(-rows // t)) % 2 == 0:
                    tr = t
                    break
                t -= pack
    return tr


def _pick_spatial_tile(S, C, itemsize, target_bytes, multi_tc, n_batch):
    """Lane-dim tile for the (N, C, S) channels_first view."""
    if S <= 128:
        # TODO(synk): S < 128 leaves lanes under-filled (masked partial
        # stores); folding N into the lane axis would require an HBM
        # transpose, so tiny-spatial inputs accept the penalty.
        return S
    budget = (target_bytes // max(1, C * itemsize)) // 128 * 128
    budget = int(max(128, min(budget, 8192)))

    if S <= budget:
        if multi_tc and n_batch == 1 and S >= 256:
            half = ((S + 1) // 2 + 127) // 128 * 128
            return min(half, S)
        return S

    ts = budget
    floor = max(128, ts // 2)
    t = ts
    while t >= floor:
        if S % t == 0:
            ts = t
            break
        t -= 128
    if multi_tc and n_batch == 1:
        steps = -(-S // ts)
        if steps % 2:
            t = ts
            while t >= floor:
                if (-(-S // t)) % 2 == 0:
                    ts = t
                    break
                t -= 128
    return ts


# ---------------------------------------------------------------------------
# pallas_call wrappers
# ---------------------------------------------------------------------------

def _layer_norm_2d_packed(x2, weight, bias, eps, k, target_bytes, vmem_cap,
                          multi_tc):
    rows, C = x2.shape
    rows_p = rows // k
    Cp = k * C                                   # == 128
    itemsize = jnp.dtype(x2.dtype).itemsize
    xp = x2.reshape(rows_p, Cp)                  # contiguous view, free
    wp = jnp.tile(weight.reshape(1, C), (1, k))  # (1, 128)
    bp = jnp.tile(bias.reshape(1, C), (1, k))

    tr = _pick_row_tile(rows_p, Cp, itemsize, target_bytes, multi_tc)
    kernel = functools.partial(_layernorm_last_packed_kernel,
                               eps=float(eps), k=k, c=C)
    yp = pl.pallas_call(
        kernel,
        out_shape=jax.ShapeDtypeStruct((rows_p, Cp), x2.dtype),
        grid_spec=pltpu.PrefetchScalarGridSpec(
            num_scalar_prefetch=0,
            grid=(pl.cdiv(rows_p, tr),),
            in_specs=[
                pl.BlockSpec((tr, Cp), lambda i: (i, 0)),
                pl.BlockSpec((1, Cp), lambda i: (0, 0)),
                pl.BlockSpec((1, Cp), lambda i: (0, 0)),
            ],
            out_specs=pl.BlockSpec((tr, Cp), lambda i: (i, 0)),
        ),
        compiler_params=pltpu.CompilerParams(
            dimension_semantics=("parallel",),
            vmem_limit_bytes=_vmem_limit_bytes(tr * Cp * itemsize, vmem_cap),
        ),
    )(xp, wp, bp)
    return yp.reshape(rows, C)


def _layer_norm_2d(x2, weight, bias, eps, target_bytes, vmem_cap, multi_tc):
    rows, C = x2.shape
    itemsize = jnp.dtype(x2.dtype).itemsize

    # Small-C lane-packing: fold k rows into the lane dim so the output last
    # dim is a full 128 lanes (unmasked stores) — the biggest single lever.
    if C < 128 and 128 % C == 0:
        k = 128 // C
        if rows % k == 0 and rows >= k:
            return _layer_norm_2d_packed(x2, weight, bias, eps, k,
                                         target_bytes, vmem_cap, multi_tc)
        # TODO(synk): rows not divisible by 128//C falls back to the masked
        # partial-store path below.

    tr = _pick_row_tile(rows, C, itemsize, target_bytes, multi_tc)
    kernel = functools.partial(_layernorm_last_kernel, eps=float(eps))
    return pl.pallas_call(
        kernel,
        out_shape=jax.ShapeDtypeStruct((rows, C), x2.dtype),
        grid_spec=pltpu.PrefetchScalarGridSpec(
            num_scalar_prefetch=0,
            grid=(pl.cdiv(rows, tr),),
            in_specs=[
                pl.BlockSpec((tr, C), lambda i: (i, 0)),
                pl.BlockSpec((1, C), lambda i: (0, 0)),
                pl.BlockSpec((1, C), lambda i: (0, 0)),
            ],
            out_specs=pl.BlockSpec((tr, C), lambda i: (i, 0)),
        ),
        compiler_params=pltpu.CompilerParams(
            dimension_semantics=("parallel",),
            vmem_limit_bytes=_vmem_limit_bytes(tr * C * itemsize, vmem_cap),
        ),
    )(x2, weight.reshape(1, C), bias.reshape(1, C))


def _layer_norm_channels_first(x, weight, bias, eps, target_bytes, vmem_cap,
                               multi_tc):
    # x: (N, C, *spatial). Normalize over C without any HBM transpose:
    # flatten spatial into lanes, reduce over C on the sublane axis.
    N, C = x.shape[0], x.shape[1]
    spatial = x.shape[2:]
    S = int(np.prod(spatial)) if spatial else 1
    x3 = x.reshape(N, C, S)
    itemsize = jnp.dtype(x.dtype).itemsize
    ts = _pick_spatial_tile(S, C, itemsize, target_bytes, multi_tc, N)
    w3 = weight.reshape(1, C, 1)
    b3 = bias.reshape(1, C, 1)

    kernel = functools.partial(_layernorm_cf_kernel, eps=float(eps))
    y3 = pl.pallas_call(
        kernel,
        out_shape=jax.ShapeDtypeStruct((N, C, S), x.dtype),
        grid_spec=pltpu.PrefetchScalarGridSpec(
            num_scalar_prefetch=0,
            grid=(N, pl.cdiv(S, ts)),
            in_specs=[
                pl.BlockSpec((1, C, ts), lambda n, s: (n, 0, s)),
                pl.BlockSpec((1, C, 1), lambda n, s: (0, 0, 0)),
                pl.BlockSpec((1, C, 1), lambda n, s: (0, 0, 0)),
            ],
            out_specs=pl.BlockSpec((1, C, ts), lambda n, s: (n, 0, s)),
        ),
        compiler_params=pltpu.CompilerParams(
            dimension_semantics=("parallel", "parallel"),
            vmem_limit_bytes=_vmem_limit_bytes(C * ts * itemsize, vmem_cap),
        ),
    )(x3, w3, b3)
    return y3.reshape(x.shape)


def layer_norm(x, weight, bias, *, eps=1e-6, data_format="channels_last"):
    if data_format not in ("channels_first", "channels_last"):
        raise NotImplementedError(f"Data Format {data_format} missing.")

    target_bytes, vmem_cap, multi_tc = _tpu_caps()

    if data_format == "channels_first":
        # Module spec assumes 5-D NCDHW (permute(0,2,3,4,1) equivalent);
        # this path handles any (N, C, *spatial) without HBM transposes.
        return _layer_norm_channels_first(x, weight, bias, eps,
                                          target_bytes, vmem_cap, multi_tc)

    orig_shape = x.shape
    C = orig_shape[-1]
    rows = int(np.prod(orig_shape[:-1])) if len(orig_shape) > 1 else 1
    y2 = _layer_norm_2d(x.reshape(rows, C), weight, bias, eps,
                        target_bytes, vmem_cap, multi_tc)
    return y2.reshape(orig_shape)


# ---------------------------------------------------------------------------
# Pure-JAX reference + self-test
# ---------------------------------------------------------------------------

def _ref_layer_norm_last(x, weight, bias, eps):
    x32 = x.astype(jnp.float32)
    mean = jnp.mean(x32, axis=-1, keepdims=True)
    var = jnp.mean((x32 - mean) ** 2, axis=-1, keepdims=True)
    y = (x32 - mean) * lax.rsqrt(var + eps) * weight + bias
    return y.astype(x.dtype)


if __name__ == "__main__":
    key = jax.random.PRNGKey(0)
    k1, k2, k3, k4, k5 = jax.random.split(key, 5)
    eps = 1e-6

    # ---- channels_last, hidden=32 (lane-packed path, k=4) ----
    hidden = 32
    w_cl = 1.0 + 0.1 * jax.random.normal(k4, (hidden,), jnp.float32)
    b_cl = 0.1 * jax.random.normal(k5, (hidden,), jnp.float32)
    x_cl = jax.random.normal(k1, (2, 8, hidden), jnp.float32)
    y_cl = jax.block_until_ready(
        layer_norm(x_cl, w_cl, b_cl, eps=eps, data_format="channels_last"))
    ref_cl = _ref_layer_norm_last(x_cl, w_cl, b_cl, eps)
    np.testing.assert_allclose(np.asarray(y_cl), np.asarray(ref_cl),
                               atol=2e-5, rtol=2e-5)

    # ---- channels_last, hidden=128 (regular lane-dense path) ----
    hidden2 = 128
    w2 = jnp.ones((hidden2,), jnp.float32)
    b2 = jnp.zeros((hidden2,), jnp.float32)
    x2 = jax.random.normal(k3, (2, 6, hidden2), jnp.float32)
    y2 = jax.block_until_ready(
        layer_norm(x2, w2, b2, eps=eps, data_format="channels_last"))
    ref2 = _ref_layer_norm_last(x2, w2, b2, eps)
    np.testing.assert_allclose(np.asarray(y2), np.asarray(ref2),
                               atol=2e-5, rtol=2e-5)

    # ---- channels_last, hidden=32 with rows not divisible by k (fallback) ----
    x3 = jax.random.normal(k3, (3, 5, hidden), jnp.float32)
    y3 = jax.block_until_ready(
        layer_norm(x3, w_cl, b_cl, eps=eps, data_format="channels_last"))
    ref3 = _ref_layer_norm_last(x3, w_cl, b_cl, eps)
    np.testing.assert_allclose(np.asarray(y3), np.asarray(ref3),
                               atol=2e-5, rtol=2e-5)

    # ---- channels_first: x NCDHW (batch=2, channels=8, D=4, H=4, W=4) ----
    channels = 8
    w_cf = 1.0 + 0.1 * jax.random.normal(k4, (channels,), jnp.float32)
    b_cf = 0.1 * jax.random.normal(k5, (channels,), jnp.float32)
    x_cf = jax.random.normal(k2, (2, channels, 4, 4, 4), jnp.float32)
    y_cf = jax.block_until_ready(
        layer_norm(x_cf, w_cf, b_cf, eps=eps, data_format="channels_first"))
    ref_cf = jnp.transpose(
        _ref_layer_norm_last(jnp.transpose(x_cf, (0, 2, 3, 4, 1)), w_cf, b_cf, eps),
        (0, 4, 1, 2, 3),
    )
    np.testing.assert_allclose(np.asarray(y_cf), np.asarray(ref_cf),
                               atol=2e-5, rtol=2e-5)

    print("KERNEL_OK")
</pallas_src>

<mosaic_0001>
module attributes {stable_mosaic.version = 11 : i64} {
  func.func @_layernorm_last_packed_kernel(%arg0: i32, %arg1: memref<4x128xf32, #tpu.memory_space<vmem>>, %arg2: memref<1x128xf32, #tpu.memory_space<vmem>>, %arg3: memref<1x128xf32, #tpu.memory_space<vmem>>, %arg4: memref<4x128xf32, #tpu.memory_space<vmem>>) attributes {dimension_semantics = [#tpu.dimension_semantics<parallel>], iteration_bounds = array<i64: 1>, scalar_prefetch = 0 : i64, scratch_operands = 0 : i64, tpu.core_type = #tpu.core_type<tc>, window_params = [{transform_indices = @transform_0, window_bounds = array<i64: 4, 128>}, {pipeline_mode = #tpu.pipeline_mode<synchronous>, transform_indices = @transform_1, window_bounds = array<i64: 1, 128>}, {pipeline_mode = #tpu.pipeline_mode<synchronous>, transform_indices = @transform_2, window_bounds = array<i64: 1, 128>}, {transform_indices = @transform_3, window_bounds = array<i64: 4, 128>}]} {
    %c0 = arith.constant 0 : index
    %c0_0 = arith.constant 0 : index
    %0 = vector.load %arg1[%c0, %c0_0] : memref<4x128xf32, #tpu.memory_space<vmem>>, vector<4x128xf32>
    %1 = vector.shape_cast %0 : vector<4x128xf32> to vector<4x4x32xf32>
    %cst = arith.constant dense<0.000000e+00> : vector<4x4xf32>
    %2 = vector.multi_reduction <add>, %1, %cst [2] : vector<4x4x32xf32> to vector<4x4xf32>
    %3 = vector.shape_cast %2 : vector<4x4xf32> to vector<4x4x1xf32>
    %cst_1 = arith.constant 3.200000e+01 : f32
    %4 = vector.broadcast %cst_1 : f32 to vector<4x4x1xf32>
    %5 = arith.divf %3, %4 : vector<4x4x1xf32>
    %6 = arith.mulf %1, %1 : vector<4x4x32xf32>
    %cst_2 = arith.constant dense<0.000000e+00> : vector<4x4xf32>
    %7 = vector.multi_reduction <add>, %6, %cst_2 [2] : vector<4x4x32xf32> to vector<4x4xf32>
    %8 = vector.shape_cast %7 : vector<4x4xf32> to vector<4x4x1xf32>
    %cst_3 = arith.constant 3.200000e+01 : f32
    %9 = vector.broadcast %cst_3 : f32 to vector<4x4x1xf32>
    %10 = arith.divf %8, %9 : vector<4x4x1xf32>
    %11 = arith.mulf %5, %5 : vector<4x4x1xf32>
    %12 = arith.subf %10, %11 : vector<4x4x1xf32>
    %cst_4 = arith.constant 0.000000e+00 : f32
    %13 = vector.broadcast %cst_4 : f32 to vector<4x4x1xf32>
    %14 = arith.maximumf %12, %13 : vector<4x4x1xf32>
    %cst_5 = arith.constant 9.99999997E-7 : f32
    %15 = vector.broadcast %cst_5 : f32 to vector<4x4x1xf32>
    %16 = arith.addf %14, %15 : vector<4x4x1xf32>
    %17 = math.rsqrt %16 : vector<4x4x1xf32>
    %18 = vector.broadcast %5 : vector<4x4x1xf32> to vector<4x4x32xf32>
    %19 = arith.subf %1, %18 : vector<4x4x32xf32>
    %20 = vector.broadcast %17 : vector<4x4x1xf32> to vector<4x4x32xf32>
    %21 = arith.mulf %19, %20 : vector<4x4x32xf32>
    %22 = vector.shape_cast %21 : vector<4x4x32xf32> to vector<4x128xf32>
    %c0_6 = arith.constant 0 : index
    %c0_7 = arith.constant 0 : index
    %23 = vector.load %arg2[%c0_6, %c0_7] : memref<1x128xf32, #tpu.memory_space<vmem>>, vector<1x128xf32>
    %c0_8 = arith.constant 0 : index
    %c0_9 = arith.constant 0 : index
    %24 = vector.load %arg3[%c0_8, %c0_9] : memref<1x128xf32, #tpu.memory_space<vmem>>, vector<1x128xf32>
    %25 = vector.broadcast %23 : vector<1x128xf32> to vector<4x128xf32>
    %26 = arith.mulf %22, %25 : vector<4x128xf32>
    %27 = vector.broadcast %24 : vector<1x128xf32> to vector<4x128xf32>
    %28 = arith.addf %26, %27 : vector<4x128xf32>
    %c0_10 = arith.constant 0 : index
    %c0_11 = arith.constant 0 : index
    %29 = vector.load %arg4[%c0_10, %c0_11] : memref<4x128xf32, #tpu.memory_space<vmem>>, vector<4x128xf32>
    tpu.vector_store %arg4[%c0_10, %c0_11], %28 {strides = array<i32>} : memref<4x128xf32, #tpu.memory_space<vmem>>, vector<4x128xf32>,
    return
  }
  func.func @transform_0(%arg0: i32) -> (i32, i32) {
    %c0_i32 = arith.constant 0 : i32
    %c0_i32_0 = arith.constant 0 : i32
    return %arg0, %c0_i32 : i32, i32
  }
  func.func @transform_1(%arg0: i32) -> (i32, i32) {
    %c0_i32 = arith.constant 0 : i32
    %c0_i32_0 = arith.constant 0 : i32
    %c0_i32_1 = arith.constant 0 : i32
    return %c0_i32, %c0_i32_0 : i32, i32
  }
  func.func @transform_2(%arg0: i32) -> (i32, i32) {
    %c0_i32 = arith.constant 0 : i32
    %c0_i32_0 = arith.constant 0 : i32
    %c0_i32_1 = arith.constant 0 : i32
    return %c0_i32, %c0_i32_0 : i32, i32
  }
  func.func @transform_3(%arg0: i32) -> (i32, i32) {
    %c0_i32 = arith.constant 0 : i32
    %c0_i32_0 = arith.constant 0 : i32
    return %arg0, %c0_i32 : i32, i32
  }
}

</mosaic_0001>

<llo_original>
// kernel: tpu_custom_call.1
$region0: #{tpu_custom_call.1}
  #allocation0 [shape = 'u32[]', space=smem, size = 0x4, offset = 0x4, fixed_abs, tag = 'smem constant byte address 0x4 - core index']
  #allocation1 [shape = 'u32[144,128]{1,0:T(1,128)}', space=vmem, size = 0x12000, scoped, tag = 'internal scratch']
  %s0 = inlined_call_operand.hbm [shape: f32[4,128], index: 0, kind: input, shape index: {}]
  %s1 = inlined_call_operand.vmem [shape: f32[1,128], index: 1, kind: input, shape index: {}]
  %s2 = inlined_call_operand.vmem [shape: f32[1,128], index: 2, kind: input, shape index: {}]
  %s3 = inlined_call_operand.hbm [shape: f32[4,128], index: 3, kind: output, shape index: {}]
  %s4 = sld [smem:[#allocation0]]
  $region26: #{tpu_custom_call.1} parent=0
    _
  %s6 = ssub.s32 1, %s4
  %s7 = scalar_select 0, %s6, %s4
  $region1: #{tpu_custom_call.1} parent=0
    #allocation2 [shape = 'u8[2048]{0}', space=vmem, size = 0x800, scoped, tag = 'input window, operand 0, single buffered']
    #allocation3 [shape = 's32[1]{0}', space=sflag, size = 0x4, scoped, tag = 'scoped memory for tpu_custom_call.1']
    #allocation4 [shape = 's32[1]{0}', space=sflag, size = 0x4, scoped, tag = 'scoped memory for tpu_custom_call.1']
    #allocation5 [shape = 'u8[2048]{0}', space=vmem, size = 0x800, scoped, tag = 'output window, operand 0, single buffered']
    %8 = vsyncpa [#allocation3], 0
    %9 = vsyncpa [#allocation4], 0
    // Predicated region
    $region2: #{tpu_custom_call.1} parent=1 // pred_check
      _
    $region3: #{tpu_custom_call.1} parent=1 // pred_check_branch
      %11 = sbr.rel (0) target = $region5
    $region4: #{tpu_custom_call.1} parent=1 // pred_region
      %s13 = ssub.s32 64, 64
      %14 = vsyncadd [#allocation3], %s13
      %s16 = sshll.u32 [#allocation2], 4
      %s17 = int_to_ptr.vmem [resolvable:$true] %s16
      %19 = dma.hbm_to_vmem [thread:$0]  %s0, 64, %s17, [#allocation3]
    $region5: #{tpu_custom_call.1} parent=1 // pred_fallthru
      _
    // Predicated region
    $region6: #{tpu_custom_call.1} parent=1 // pred_check
      _
    $region7: #{tpu_custom_call.1} parent=1 // pred_check_branch
      %21 = sbr.rel (0) target = $region9
    $region8: #{tpu_custom_call.1} parent=1 // pred_region
      _
    $region9: #{tpu_custom_call.1} parent=1 // pred_fallthru
      _
    // Predicated region
    $region10: #{tpu_custom_call.1} parent=1 // pred_check
      _
    $region11: #{tpu_custom_call.1} parent=1 // pred_check_branch
      %23 = sbr.rel (0) target = $region13
    $region12: #{tpu_custom_call.1} parent=1 // pred_region
      _
    $region13: #{tpu_custom_call.1} parent=1 // pred_fallthru
      _
    // Predicated region
    $region14: #{tpu_custom_call.1} parent=1 // pred_check
      _
    $region15: #{tpu_custom_call.1} parent=1 // pred_check_branch
      %25 = sbr.rel (0) target = $region17
    $region16: #{tpu_custom_call.1} parent=1 // pred_region
      %26 = dma.done [#allocation3], 64
    $region17: #{tpu_custom_call.1} parent=1 // pred_fallthru
      _
    %v27 = vld [vmem:[#allocation2] sm:$0xf]
    %29 = vrot.lane.b32.xlu0 %v27, 96
    %v30 = vpop.permute.xlu0 %29
    %32 = vrot.lane.b32.xlu0 %v27, 64
    %v33 = vpop.permute.xlu0 %32
    %35 = vrot.lane.b32.xlu0 %v27, 32
    %v36 = vpop.permute.xlu0 %35
    %v38 = vcombine.low %v27, %v33
    %v40 = vunpack.c.l.s4 1983009808
    %v41 = vunpack.c.0.s8 %v40
    %v42 = vlaneseq
    %v43 = vshrl.u32 %v42, 7
    %v44 = vsub.s32 %v41, %v43
    %v45 = vrot.slane %v38, %v44
    %v46 = vcombine.low %v30, %v36
    %v48 = vunpack.c.l.s4 1983009808
    %v49 = vunpack.c.0.s8 %v48
    %v50 = vlaneseq
    %v51 = vshrl.u32 %v50, 7
    %v52 = vsub.s32 %v49, %v51
    %v53 = vrot.slane %v46, %v52
    %v54 = vcombine.low %v45, %v53
    %v55 = vcombine.high %v45, %v53
    %v57 = vunpack.c.l.s4 1934713408
    %v58 = vunpack.c.0.s8 %v57
    %v59 = vlaneseq
    %v60 = vshrl.u32 %v59, 7
    %v61 = vsub.s32 %v58, %v60
    %v62 = vrot.slane %v54, %v61
    %v64 = vunpack.c.l.s4 1934713408
    %v65 = vunpack.c.0.s8 %v64
    %v66 = vlaneseq
    %v67 = vshrl.u32 %v66, 7
    %v68 = vsub.s32 %v65, %v67
    %v69 = vrot.slane %v55, %v68
    %v70 = vcombine.high %v62, 0.0
    %v71 = vcombine.high %v69, 0.0
    %vm72 = vcmask 257024
    %v73 = vsel %vm72, %v62, 0.0
    %74 = vadd.xlane.f32.xlu0 %v73
    %v75 = vpop.xlane.xlu0 %74
    %v76 = vsel %vm72, %v70, 0.0
    %77 = vadd.xlane.f32.xlu0 %v76
    %v78 = vpop.xlane.xlu0 %77
    %v79 = vsel %vm72, %v69, 0.0
    %80 = vadd.xlane.f32.xlu0 %v79
    %v81 = vpop.xlane.xlu0 %80
    %v82 = vsel %vm72, %v71, 0.0
    %83 = vadd.xlane.f32.xlu0 %v82
    %v84 = vpop.xlane.xlu0 %83
    %v85 = vrcp.pop 32.0
    %v86 = vmul.f32 %v75, %v85
    %v87 = vmul.f32 %v78, %v85
    %v88 = vmul.f32 %v81, %v85
    %v89 = vmul.f32 %v84, %v85
    %v90 = vmul.f32 %v62, %v62
    %v91 = vmul.f32 %v70, %v70
    %v92 = vmul.f32 %v69, %v69
    %v93 = vmul.f32 %v71, %v71
    %v94 = vsel %vm72, %v90, 0.0
    %95 = vadd.xlane.f32.xlu0 %v94
    %v96 = vpop.xlane.xlu0 %95
    %v97 = vsel %vm72, %v91, 0.0
    %98 = vadd.xlane.f32.xlu0 %v97
    %v99 = vpop.xlane.xlu0 %98
    %v100 = vsel %vm72, %v92, 0.0
    %101 = vadd.xlane.f32.xlu0 %v100
    %v102 = vpop.xlane.xlu0 %101
    %v103 = vsel %vm72, %v93, 0.0
    %104 = vadd.xlane.f32.xlu0 %v103
    %v105 = vpop.xlane.xlu0 %104
    %v106 = vmul.f32 %v96, %v85
    %v107 = vmul.f32 %v99, %v85
    %v108 = vmul.f32 %v102, %v85
    %v109 = vmul.f32 %v105, %v85
    %v110 = vmul.f32 %v86, %v86
    %v111 = vmul.f32 %v87, %v87
    %v112 = vmul.f32 %v88, %v88
    %v113 = vmul.f32 %v89, %v89
    %v114 = vsub.f32 %v106, %v110
    %v115 = vsub.f32 %v107, %v111
    %v116 = vsub.f32 %v108, %v112
    %v117 = vsub.f32 %v109, %v113
    %v118 = vmax.f32 %v114, 0.0
    %v119 = vmax.f32 %v115, 0.0
    %v120 = vmax.f32 %v116, 0.0
    %v121 = vmax.f32 %v117, 0.0
    %v122 = vadd.f32 %v118, 1e-06
    %v123 = vadd.f32 %v119, 1e-06
    %v124 = vadd.f32 %v120, 1e-06
    %v125 = vadd.f32 %v121, 1e-06
    %v126 = vrsqrt.pop %v122
    %v127 = vrsqrt.pop %v123
    %v128 = vrsqrt.pop %v124
    %v129 = vrsqrt.pop %v125
    %v130 = vsub.f32 %v62, %v86
    %v131 = vsub.f32 %v70, %v87
    %v132 = vsub.f32 %v69, %v88
    %v133 = vsub.f32 %v71, %v89
    %v134 = vmul.f32 %v130, %v126
    %v135 = vmul.f32 %v131, %v127
    %v136 = vmul.f32 %v132, %v128
    %v137 = vmul.f32 %v133, %v129
    %v138 = vcombine.low %v134, %v136
    %v140 = vunpack.c.l.s4 1983009808
    %v141 = vunpack.c.0.s8 %v140
    %v142 = vlaneseq
    %v143 = vshrl.u32 %v142, 7
    %v144 = vsub.s32 %v141, %v143
    %v145 = vrot.slane %v138, %v144
    %v146 = vcombine.low %v135, %v137
    %v148 = vunpack.c.l.s4 1983009808
    %v149 = vunpack.c.0.s8 %v148
    %v150 = vlaneseq
    %v151 = vshrl.u32 %v150, 7
    %v152 = vsub.s32 %v149, %v151
    %v153 = vrot.slane %v146, %v152
    %v154 = vcombine.low %v145, %v153
    %v155 = vcombine.high %v145, %v153
    %v157 = vunpack.c.l.s4 1934713408
    %v158 = vunpack.c.0.s8 %v157
    %v159 = vlaneseq
    %v160 = vshrl.u32 %v159, 7
    %v161 = vsub.s32 %v158, %v160
    %v162 = vrot.slane %v154, %v161
    %v164 = vunpack.c.l.s4 1934713408
    %v165 = vunpack.c.0.s8 %v164
    %v166 = vlaneseq
    %v167 = vshrl.u32 %v166, 7
    %v168 = vsub.s32 %v165, %v167
    %v169 = vrot.slane %v155, %v168
    %v170 = vcombine.high %v162, 0.0
    %v171 = vcombine.high %v169, 0.0
    %173 = vrot.lane.b32.xlu0 %v170, 32
    %v174 = vpop.permute.xlu0 %173
    %177 = vrot.lane.b32.xlu0 %v169, 64
    %v178 = vpop.permute.xlu0 %177
    %181 = vrot.lane.b32.xlu0 %v171, 96
    %v182 = vpop.permute.xlu0 %181
    %vm184 = vcmask 261120
    %v185 = vsel %vm184, %v162, %v174
    %vm186 = vcmask 523264
    %v187 = vsel %vm186, %v185, %v178
    %vm188 = vcmask 785408
    %v189 = vsel %vm188, %v187, %v182
    %v190 = vld [vmem:[%s1] sm:$0x1]
    %v191 = vld [vmem:[%s2] sm:$0x1]
    %v193 = vlaneseq
    %v194 = vshrl.u32 %v193, 7
    %v195 = vsub.s32 0, %v194
    %v196 = vrot.slane %v190, %v195
    %v198 = vmul.f32 %v189, %v196
    %v200 = vlaneseq
    %v201 = vshrl.u32 %v200, 7
    %v202 = vsub.s32 0, %v201
    %v203 = vrot.slane %v191, %v202
    %v205 = vadd.f32 %v198, %v203
    %206 = vst [vmem:[#allocation5] sm:$0xf] %v205
    // Predicated region
    $region18: #{tpu_custom_call.1} parent=1 // pred_check
      _
    $region19: #{tpu_custom_call.1} parent=1 // pred_check_branch
      %208 = sbr.rel (0) target = $region21
    $region20: #{tpu_custom_call.1} parent=1 // pred_region
      %s210 = ssub.s32 64, 64
      %211 = vsyncadd [#allocation4], %s210
      %s213 = sshll.u32 [#allocation5], 4
      %s214 = int_to_ptr.vmem [resolvable:$true] %s213
      %216 = dma.vmem_to_hbm [thread:$0]  %s214, 64, %s3, [#allocation4]
    $region21: #{tpu_custom_call.1} parent=1 // pred_fallthru
      _
    // Predicated region
    $region22: #{tpu_custom_call.1} parent=1 // pred_check
      _
    $region23: #{tpu_custom_call.1} parent=1 // pred_check_branch
      %218 = sbr.rel (0) target = $region25
    $region24: #{tpu_custom_call.1} parent=1 // pred_region
      %219 = dma.done [#allocation4], 64
    $region25: #{tpu_custom_call.1} parent=1 // pred_fallthru
      _
    %220 = vsyncpa [#allocation3], 1
    %221 = vsyncpa [#allocation4], 1

</llo_original>
